<compile_context>
chip_gen: v5e
topology: v5e:2x2
jax: 0.10.0
libtpu: 0.0.40
codegen_flags: <defaults>
</compile_context>

<pallas_src>
import functools
import numpy as np
import jax
import jax.numpy as jnp
from jax import lax
from jax.experimental import pallas as pl
from jax.experimental.pallas import tpu as pltpu

TARGET_STEP_BYTES = 3 << 20          # ~3 MiB of streamed (row-tiled) data per grid step
MIN_GRID_STEPS = 4                   # >= 2 pipelined steps per TensorCore on v7x megacore
VMEM_LIMIT_BYTES = 48 * 1024 * 1024  # explicit scoped-VMEM budget (v7x: 64 MiB physical)

_PARAMS_1D = pltpu.CompilerParams(dimension_semantics=("parallel",),
                                  vmem_limit_bytes=VMEM_LIMIT_BYTES)


def _round_up(x, m):
    return ((x + m - 1) // m) * m


def _row_tile(rows, bytes_per_row):
    """Byte-budget-driven row tile: ~TARGET_STEP_BYTES of streamed data per grid
    step, >= MIN_GRID_STEPS steps when rows permit, multiple of 8 sublanes."""
    rows = int(rows)
    if rows <= 8:
        return max(rows, 1)                     # full-dim block (allowed when == dim)
    t_budget = max(8, (TARGET_STEP_BYTES // max(int(bytes_per_row), 1)) // 8 * 8)
    t_steps = max(8, (rows // MIN_GRID_STEPS) // 8 * 8)
    t_cap = max(8, rows // 8 * 8)
    return int(min(t_budget, t_steps, t_cap))


def _tiled(t, ncols):
    return pl.BlockSpec((t, ncols), lambda i: (i, 0))


def _rep(shape):
    return pl.BlockSpec(shape, lambda i: (0,) * len(shape))


def _act(y, kind):
    if kind == "none":
        return y
    if kind == "silu":
        return y * jax.nn.sigmoid(y)
    if kind == "sigmoid":
        return jax.nn.sigmoid(y)
    raise ValueError(kind)


def _dot(x, w):
    return jnp.dot(x, w, preferred_element_type=jnp.float32)


def _row_call(kernel, rows, tiled_inputs, rep_inputs, out_cols):
    """Row-tiled pallas_call.  tiled_inputs are [rows, c] arrays streamed in row
    tiles; rep_inputs (weights / biases) are resident every grid step.
    out_cols: int (single output) or tuple of ints (multiple outputs)."""
    out_list = list(out_cols) if isinstance(out_cols, (tuple, list)) else [out_cols]
    bytes_per_row = 4 * (sum(a.shape[1] for a in tiled_inputs) + sum(out_list))
    t = _row_tile(rows, bytes_per_row)
    grid = (pl.cdiv(rows, t),)
    in_specs = ([_tiled(t, a.shape[1]) for a in tiled_inputs]
                + [_rep(a.shape) for a in rep_inputs])
    if isinstance(out_cols, (tuple, list)):
        out_shape = tuple(jax.ShapeDtypeStruct((rows, c), jnp.float32) for c in out_cols)
        out_specs = tuple(_tiled(t, c) for c in out_cols)
    else:
        out_shape = jax.ShapeDtypeStruct((rows, out_cols), jnp.float32)
        out_specs = _tiled(t, out_cols)
    return pl.pallas_call(
        kernel,
        out_shape=out_shape,
        grid=grid,
        in_specs=in_specs,
        out_specs=out_specs,
        compiler_params=_PARAMS_1D,
    )(*tiled_inputs, *rep_inputs)


# ----------------------------------------------------------------------------
# Kernel: y = act(x @ w + b)
# ----------------------------------------------------------------------------
def _linear_kernel(x_ref, w_ref, b_ref, o_ref, *, act):
    o_ref[...] = _act(_dot(x_ref[...], w_ref[...]) + b_ref[...], act)


def linear(x, w, b, act="none"):
    return _row_call(
        functools.partial(_linear_kernel, act=act),
        x.shape[0],
        [x.astype(jnp.float32)],
        [w.astype(jnp.float32), b.reshape(1, -1).astype(jnp.float32)],
        w.shape[1])


# ----------------------------------------------------------------------------
# Kernel: LayerNorm over the last (feature) axis
# ----------------------------------------------------------------------------
def _ln_kernel(x_ref, g_ref, b_ref, o_ref, *, eps):
    x = x_ref[...]
    mu = jnp.mean(x, axis=-1, keepdims=True)
    var = jnp.mean((x - mu) ** 2, axis=-1, keepdims=True)
    o_ref[...] = (x - mu) * lax.rsqrt(var + eps) * g_ref[...] + b_ref[...]


def layernorm(x, g, b, eps=1e-5):
    D = x.shape[1]
    return _row_call(
        functools.partial(_ln_kernel, eps=eps),
        x.shape[0],
        [x.astype(jnp.float32)],
        [g.reshape(1, D).astype(jnp.float32), b.reshape(1, D).astype(jnp.float32)],
        D)


# ----------------------------------------------------------------------------
# Kernel: fused initial edge producer (folds w_b, w_eij, w_r; no concat)
#   e0 = bonds @ w_b + b_b ; wr = bonds @ w_r + b_r     (one bonds matmul)
#   out = (af_src @ We_s + af_dst @ We_d + e0 @ We_e + b_eij) * wr
# ----------------------------------------------------------------------------
def _edge_init_kernel(afs_ref, afd_ref, b16_ref, wes_ref, wed_ref, wee_ref,
                      be_ref, wbr_ref, bbr_ref, o_ref, *, E):
    hbr = _dot(b16_ref[...], wbr_ref[...]) + bbr_ref[...]
    e0 = hbr[:, :E]
    wr = hbr[:, E:]
    x = (_dot(afs_ref[...], wes_ref[...]) + _dot(afd_ref[...], wed_ref[...])
         + _dot(e0, wee_ref[...]) + be_ref[...])
    o_ref[...] = x * wr


def edge_init(af_src, af_dst, bonds16, params, A, E):
    we = params["w_eij"]["w"]                       # (3E, E); rows: src | dst | edge0
    we_s, we_d, we_e = we[:A], we[A:2 * A], we[2 * A:]
    w_br = jnp.concatenate([params["w_b"]["w"], params["w_r"]["w"]], axis=1)
    b_br = jnp.concatenate([params["w_b"]["b"], params["w_r"]["b"]]).reshape(1, -1)
    return _row_call(
        functools.partial(_edge_init_kernel, E=E),
        af_src.shape[0],
        [af_src, af_dst, bonds16],
        [we_s, we_d, we_e, params["w_eij"]["b"].reshape(1, -1), w_br, b_br],
        E)


# ----------------------------------------------------------------------------
# Kernel: fused ThreeBody pre-scatter update (split W_fea matmuls, no concat)
#   fea   = silu(af_i@Wf_i + af_j@Wf_j + af_k@Wf_k + e_m@Wf_m + e_n@Wf_n + b)
#   gate  = sig(fea @ W1 + b1) * silu(fea @ W2 + b2)       (one (E,2E) matmul)
#   bj,bk = [tij||tik] @ blockdiag(Wj,Wk)                    (one (32,2E) matmul)
#   out   = gate * bj * bk * (a * w_angle + b_angle)
# ----------------------------------------------------------------------------
def _three_body_kernel(afi_ref, afj_ref, afk_ref, em_ref, en_ref, tjk_ref, ta_ref,
                       wfi_ref, wfj_ref, wfk_ref, wfm_ref, wfn_ref, bfea_ref,
                       w12_ref, b12_ref, wjk_ref, bjk_ref, wa_ref, ba_ref,
                       o_ref, *, E):
    fea = _act(_dot(afi_ref[...], wfi_ref[...]) + _dot(afj_ref[...], wfj_ref[...])
               + _dot(afk_ref[...], wfk_ref[...]) + _dot(em_ref[...], wfm_ref[...])
               + _dot(en_ref[...], wfn_ref[...]) + bfea_ref[...], "silu")
    h = _dot(fea, w12_ref[...]) + b12_ref[...]
    gate = jax.nn.sigmoid(h[:, :E]) * _act(h[:, E:], "silu")
    hb = _dot(tjk_ref[...], wjk_ref[...]) + bjk_ref[...]
    bj = hb[:, :E]
    bk = hb[:, E:]
    ang = ta_ref[...] * wa_ref[...] + ba_ref[...]   # Linear(1,E) as a VPU outer product
    o_ref[...] = gate * bj * bk * ang


def three_body(af_i, af_j, af_k, e_m, e_n, tjk32, ta, tp, A, E):
    wf = tp["W_fea"]["w"]                            # (3A+2E, E)
    wf_i, wf_j, wf_k = wf[:A], wf[A:2 * A], wf[2 * A:3 * A]
    wf_m, wf_n = wf[3 * A:3 * A + E], wf[3 * A + E:]
    w12 = jnp.concatenate([tp["W_1"]["w"], tp["W_2"]["w"]], axis=1)
    b12 = jnp.concatenate([tp["W_1"]["b"], tp["W_2"]["b"]]).reshape(1, -1)
    wjk = jnp.zeros((32, 2 * E), jnp.float32)
    wjk = wjk.at[:16, :E].set(tp["bond_j"]["w"]).at[16:, E:].set(tp["bond_k"]["w"])
    bjk = jnp.concatenate([tp["bond_j"]["b"], tp["bond_k"]["b"]]).reshape(1, -1)
    return _row_call(
        functools.partial(_three_body_kernel, E=E),
        af_i.shape[0],
        [af_i, af_j, af_k, e_m, e_n, tjk32, ta],
        [wf_i, wf_j, wf_k, wf_m, wf_n, tp["W_fea"]["b"].reshape(1, -1),
         w12, b12, wjk, bjk,
         tp["angle"]["w"].reshape(1, -1), tp["angle"]["b"].reshape(1, -1)],
        E)


# ----------------------------------------------------------------------------
# Kernel: fused EdgeUpdate (split W_1||W_2 matmuls, residual included)
# ----------------------------------------------------------------------------
def _edge_update_kernel(afs_ref, afd_ref, e_ref, b16_ref,
                        w12s_ref, w12d_ref, w12e_ref, b12_ref,
                        w3_ref, b3_ref, wr_ref, br_ref, o_ref, *, E):
    h = (_dot(afs_ref[...], w12s_ref[...]) + _dot(afd_ref[...], w12d_ref[...])
         + _dot(e_ref[...], w12e_ref[...]) + b12_ref[...])
    e1 = _act(h[:, :E], "silu") * jax.nn.sigmoid(h[:, E:])
    e2 = _act(_dot(e1, w3_ref[...]) + b3_ref[...], "silu")
    wr = _dot(b16_ref[...], wr_ref[...]) + br_ref[...]
    o_ref[...] = e_ref[...] + e2 * wr


def edge_update(af_src, af_dst, edge_ij, bonds16, ep, A, E):
    w12 = jnp.concatenate([ep["W_1"]["w"], ep["W_2"]["w"]], axis=1)   # (2A+E, 2E)
    b12 = jnp.concatenate([ep["W_1"]["b"], ep["W_2"]["b"]]).reshape(1, -1)
    w12_s, w12_d, w12_e = w12[:A], w12[A:2 * A], w12[2 * A:]
    return _row_call(
        functools.partial(_edge_update_kernel, E=E),
        af_src.shape[0],
        [af_src, af_dst, edge_ij, bonds16],
        [w12_s, w12_d, w12_e, b12,
         ep["W_3"]["w"], ep["W_3"]["b"].reshape(1, -1),
         ep["W_r"]["w"], ep["W_r"]["b"].reshape(1, -1)],
        E)


# ----------------------------------------------------------------------------
# Kernel: fused ConvLayer message computation (split fc_full, pre scatter-add)
# ----------------------------------------------------------------------------
def _conv_kernel(afs_ref, afd_ref, e_ref, b16_ref,
                 wfs_ref, wfd_ref, wfe_ref, bf_ref, w12_ref, b12_ref,
                 wr_ref, br_ref, o_ref, *, A):
    g = _act(_dot(afs_ref[...], wfs_ref[...]) + _dot(afd_ref[...], wfd_ref[...])
             + _dot(e_ref[...], wfe_ref[...]) + bf_ref[...], "silu")
    h = _dot(g, w12_ref[...]) + b12_ref[...]
    nbr = _act(h[:, :A], "silu") * jax.nn.sigmoid(h[:, A:])
    wr = _dot(b16_ref[...], wr_ref[...]) + br_ref[...]
    o_ref[...] = nbr * wr


def conv_messages(af_src, af_dst, edge_ij, bonds16, cp, A, E):
    wf = cp["fc_full"]["w"]                          # (2A+E, 2A)
    wf_s, wf_d, wf_e = wf[:A], wf[A:2 * A], wf[2 * A:]
    w12 = jnp.concatenate([cp["W_1"]["w"], cp["W_2"]["w"]], axis=1)
    b12 = jnp.concatenate([cp["W_1"]["b"], cp["W_2"]["b"]]).reshape(1, -1)
    return _row_call(
        functools.partial(_conv_kernel, A=A),
        af_src.shape[0],
        [af_src, af_dst, edge_ij, bonds16],
        [wf_s, wf_d, wf_e, cp["fc_full"]["b"].reshape(1, -1), w12, b12,
         cp["W_r"]["w"], cp["W_r"]["b"].reshape(1, -1)],
        A)


# ----------------------------------------------------------------------------
# Kernel: fused multi-head self-attention (per crystal), key-padding mask.
# Consumes the packed (B,T,3A) qkv block; heads are selected with lane masks so
# all matmuls are full-width and the output is one full-width (T,A) store.
# ----------------------------------------------------------------------------
def _attn_kernel(qkv_ref, mb_ref, o_ref, *, nhead, A):
    qkv = qkv_ref[0]                       # (T, 3A)
    bias = mb_ref[0]                       # (1, T) additive key-padding mask
    q = qkv[:, :A]
    k = qkv[:, A:2 * A]
    v = qkv[:, 2 * A:]
    dh = A // nhead
    scale = 1.0 / float(np.sqrt(dh))
    col = lax.broadcasted_iota(jnp.int32, (1, A), 1)
    out = jnp.zeros(v.shape, jnp.float32)
    for h in range(nhead):                 # nhead is static & tiny -> unrolled
        mask_h = jnp.logical_and(col >= h * dh, col < (h + 1) * dh)
        qh = jnp.where(mask_h, q, 0.0)
        kh = jnp.where(mask_h, k, 0.0)
        vh = jnp.where(mask_h, v, 0.0)
        s = lax.dot_general(qh, kh, (((1,), (1,)), ((), ())),
                            preferred_element_type=jnp.float32) * scale + bias
        s = s - jnp.max(s, axis=-1, keepdims=True)
        p = jnp.exp(s)
        p = p / jnp.sum(p, axis=-1, keepdims=True)   # exact reciprocal
        out = out + _dot(p, vh)            # vh has zeros outside head h's lanes
    o_ref[0] = out                         # single full-width store


def attention(qkv_pad, mask_bias, A, nhead=2):
    # TODO(synk): for large T, tile the KV axis with online softmax so the (T,T)
    # score matrix never materializes (v7x: 64 MiB VMEM / 32 MiB scoped default).
    B, T, threeA = qkv_pad.shape
    return pl.pallas_call(
        functools.partial(_attn_kernel, nhead=nhead, A=A),
        out_shape=jax.ShapeDtypeStruct((B, T, A), jnp.float32),
        grid=(B,),
        in_specs=[
            pl.BlockSpec((1, T, threeA), lambda b: (b, 0, 0)),
            pl.BlockSpec((1, 1, T), lambda b: (b, 0, 0)),
        ],
        out_specs=pl.BlockSpec((1, T, A), lambda b: (b, 0, 0)),
        compiler_params=_PARAMS_1D,
    )(qkv_pad, mask_bias)


# ----------------------------------------------------------------------------
# Kernels: transformer post-attention fusions (run on the N real atom rows)
#   post1: x1 = LN1(res + att @ W_out + b) ; h = x1 @ W_lin1 + b
#   post2: out = LN_ext(LN2(x1 + h @ W_lin2 + b)) + atom_fea
# ----------------------------------------------------------------------------
def _tf_post1_kernel(att_ref, res_ref, wo_ref, bo_ref, g1_ref, be1_ref,
                     wl1_ref, bl1_ref, x1_ref, h_ref, *, eps):
    a = _dot(att_ref[...], wo_ref[...]) + bo_ref[...]
    x = res_ref[...] + a
    mu = jnp.mean(x, axis=-1, keepdims=True)
    var = jnp.mean((x - mu) ** 2, axis=-1, keepdims=True)
    x1 = (x - mu) * lax.rsqrt(var + eps) * g1_ref[...] + be1_ref[...]
    x1_ref[...] = x1
    h_ref[...] = _dot(x1, wl1_ref[...]) + bl1_ref[...]


def tf_post1(att_real, atom_fea, trp, A):
    return _row_call(
        functools.partial(_tf_post1_kernel, eps=1e-5),
        att_real.shape[0],
        [att_real, atom_fea],
        [trp["out_proj"]["w"], trp["out_proj"]["b"].reshape(1, -1),
         trp["ln1_g"].reshape(1, -1), trp["ln1_b"].reshape(1, -1),
         trp["lin1"]["w"], trp["lin1"]["b"].reshape(1, -1)],
        (A, trp["lin1"]["w"].shape[1]))


def _tf_post2_kernel(h_ref, x1_ref, af_ref, wl2_ref, bl2_ref, g2_ref, be2_ref,
                     gn_ref, bn_ref, o_ref, *, eps):
    y = _dot(h_ref[...], wl2_ref[...]) + bl2_ref[...]
    x = x1_ref[...] + y
    mu = jnp.mean(x, axis=-1, keepdims=True)
    var = jnp.mean((x - mu) ** 2, axis=-1, keepdims=True)
    x2 = (x - mu) * lax.rsqrt(var + eps) * g2_ref[...] + be2_ref[...]
    mu2 = jnp.mean(x2, axis=-1, keepdims=True)
    var2 = jnp.mean((x2 - mu2) ** 2, axis=-1, keepdims=True)
    xn = (x2 - mu2) * lax.rsqrt(var2 + eps) * gn_ref[...] + bn_ref[...]
    o_ref[...] = xn + af_ref[...]


def tf_post2(h, x1, atom_fea, trp, n2, A):
    return _row_call(
        functools.partial(_tf_post2_kernel, eps=1e-5),
        h.shape[0],
        [h, x1, atom_fea],
        [trp["lin2"]["w"], trp["lin2"]["b"].reshape(1, -1),
         trp["ln2_g"].reshape(1, -1), trp["ln2_b"].reshape(1, -1),
         n2["g"].reshape(1, -1), n2["b"].reshape(1, -1)],
        A)


# ----------------------------------------------------------------------------
# Kernel: fused readout  silu(fc1) -> silu(fc2) -> fc_out
# ----------------------------------------------------------------------------
def _readout_kernel(x_ref, w1_ref, b1_ref, w2_ref, b2_ref, wo_ref, bo_ref, o_ref):
    h = _act(_dot(x_ref[...], w1_ref[...]) + b1_ref[...], "silu")
    h = _act(_dot(h, w2_ref[...]) + b2_ref[...], "silu")
    o_ref[...] = _dot(h, wo_ref[...]) + bo_ref[...]


def readout(cry, params):
    B, A = cry.shape
    wo = jnp.pad(params["fc_out"]["w"], ((0, 0), (0, 7)))       # 1 -> 8 output lanes
    bo = jnp.pad(params["fc_out"]["b"], ((0, 7),)).reshape(1, 8)
    out = pl.pallas_call(
        _readout_kernel,
        out_shape=jax.ShapeDtypeStruct((B, 8), jnp.float32),
    )(cry.astype(jnp.float32),
      params["fc1"]["w"], params["fc1"]["b"].reshape(1, A),
      params["fc2"]["w"], params["fc2"]["b"].reshape(1, A), wo, bo)
    return out[:, :1]


# ----------------------------------------------------------------------------
# Parameter init (deterministic, PyTorch-Linear-style uniform)
# ----------------------------------------------------------------------------
def _init_linear(key, fan_in, fan_out):
    k1, k2 = jax.random.split(key)
    bound = 1.0 / np.sqrt(fan_in)
    return {"w": jax.random.uniform(k1, (fan_in, fan_out), jnp.float32, -bound, bound),
            "b": jax.random.uniform(k2, (fan_out,), jnp.float32, -bound, bound)}


def init_params(key, A, E, n_layers):
    keys = iter(jax.random.split(key, 256))
    p = {"emb": jax.random.normal(next(keys), (95, A), jnp.float32),
         "w_b": _init_linear(next(keys), 16, E),
         "w_eij": _init_linear(next(keys), 3 * E, E),
         "w_r": _init_linear(next(keys), 16, E),
         "convs": [], "three": [], "edge": [], "trans": [], "norm1": [], "norm2": []}
    for _ in range(n_layers):
        p["convs"].append({
            "fc_full": _init_linear(next(keys), 2 * A + E, 2 * A),
            "W_1": _init_linear(next(keys), 2 * A, A),
            "W_2": _init_linear(next(keys), 2 * A, A),
            "W_r": _init_linear(next(keys), 16, A),
        })
        p["edge"].append({
            "W_1": _init_linear(next(keys), 2 * A + E, E),
            "W_2": _init_linear(next(keys), 2 * A + E, E),
            "W_r": _init_linear(next(keys), 16, E),
            "W_3": _init_linear(next(keys), E, E),
        })
        p["three"].append({
            "angle": _init_linear(next(keys), 1, E),
            "bond_k": _init_linear(next(keys), 16, E),
            "bond_j": _init_linear(next(keys), 16, E),
            "W_fea": _init_linear(next(keys), 3 * A + 2 * E, E),
            "W_1": _init_linear(next(keys), E, E),
            "W_2": _init_linear(next(keys), E, E),
        })
        p["trans"].append({
            "in_proj": _init_linear(next(keys), A, 3 * A),
            "out_proj": _init_linear(next(keys), A, A),
            "lin1": _init_linear(next(keys), A, 256),
            "lin2": _init_linear(next(keys), 256, A),
            "ln1_g": jnp.ones((A,)), "ln1_b": jnp.zeros((A,)),
            "ln2_g": jnp.ones((A,)), "ln2_b": jnp.zeros((A,)),
        })
        p["norm1"].append({"g": jnp.ones((A,)), "b": jnp.zeros((A,))})
        p["norm2"].append({"g": jnp.ones((A,)), "b": jnp.zeros((A,))})
    p["fc1"] = _init_linear(next(keys), A, A)
    p["fc2"] = _init_linear(next(keys), A, A)
    p["fc_out"] = _init_linear(next(keys), A, 1)
    return p


# ----------------------------------------------------------------------------
# Model forward (glue in JAX, compute in the Pallas kernels above)
# ----------------------------------------------------------------------------
def ebf(d, rcut):
    filters = jnp.arange(0, 16, dtype=jnp.float32)
    return jnp.sqrt(2.0 / rcut) * jnp.sin(filters * jnp.pi / rcut * d) / d


def forward(params, atom_fea_in, bonds_r, n_atoms, triple_dist_ij, triple_dist_ik,
            triple_a_jik, nbr_atoms, n_bond_pairs_bond, bond_pairs_indices,
            A, E, n_layers):
    atom_type = atom_fea_in.reshape(-1)                 # [N,1] -> [N]
    M = nbr_atoms.shape[0]
    L = bond_pairs_indices.shape[0]
    B = len(n_atoms)

    # nn.Embedding(95, A, max_norm=True): renorm looked-up rows to L2 norm <= 1
    emb = params["emb"][atom_type]
    norms = jnp.linalg.norm(emb, axis=-1, keepdims=True)
    atom_fea = emb * jnp.minimum(1.0, 1.0 / jnp.maximum(norms, 1e-12))

    bonds16 = ebf(bonds_r[:, None], 5.0)                                  # [M,16]
    tjk32 = jnp.concatenate([ebf(triple_dist_ij[:, None], 3.5),
                             ebf(triple_dist_ik[:, None], 3.5)], axis=-1)  # [L,32]
    ta = triple_a_jik[:, None].astype(jnp.float32)                        # [L,1]

    src = nbr_atoms[:, 0]
    dst = nbr_atoms[:, 1]
    bp0 = bond_pairs_indices[:, 0]
    bp1 = bond_pairs_indices[:, 1]
    ti = src[bp1]
    tj = dst[bp0]
    tk = dst[bp1]

    # TODO(synk): row gathers (atom_fea[...], edge_ij[...]) and scatter-adds
    # (torch.index_add) stay in XLA glue; an in-kernel gather from a
    # VMEM-resident table would remove one more HBM round trip per stream.
    edge_ij = edge_init(atom_fea[src], atom_fea[dst], bonds16, params, A, E)

    n_atoms_np = np.asarray(n_atoms)
    max_len = int(n_atoms_np.max())
    T = _round_up(max_len, 8)                           # pad seq len for sublanes
    batch_ids = jnp.asarray(np.repeat(np.arange(B), n_atoms_np))
    pos_ids = jnp.asarray(np.concatenate([np.arange(n) for n in n_atoms_np]))
    mask_np = np.ones((B, T), dtype=bool)
    for bb in range(B):
        mask_np[bb, :n_atoms_np[bb]] = False
    mask_bias = jnp.where(jnp.asarray(mask_np), -1e9, 0.0).astype(jnp.float32)[:, None, :]

    # torch.repeat_interleave(arange(M), n_bond_pairs_bond)
    three_tgt = jnp.repeat(jnp.arange(M), n_bond_pairs_bond, total_repeat_length=L)

    for li in range(n_layers):
        tp, ep, cp, trp = (params["three"][li], params["edge"][li],
                           params["convs"][li], params["trans"][li])

        # per-layer atom gathers (atom_fea is constant across three/edge/conv)
        af_src = atom_fea[src]
        af_dst = atom_fea[dst]

        # ---------- ThreeBody (one fused kernel, then scatter-add) ----------
        tri_upd = three_body(atom_fea[ti], atom_fea[tj], atom_fea[tk],
                             edge_ij[bp0], edge_ij[bp1], tjk32, ta, tp, A, E)
        edge_ij = edge_ij.at[three_tgt].add(tri_upd)

        # ---------- EdgeUpdate (fused, residual included) ----------
        edge_ij = edge_update(af_src, af_dst, edge_ij, bonds16, ep, A, E)

        # ---------- ConvLayer (fused message kernel + scatter-add) ----------
        nbr_all = conv_messages(af_src, af_dst, edge_ij, bonds16, cp, A, E)
        atom_fea = atom_fea.at[src].add(nbr_all)
        atom_fea = layernorm(atom_fea, params["norm1"][li]["g"],
                             params["norm1"][li]["b"])

        # ---------- TransformerEncoderLayer (post-norm, nhead=2, exact gelu) ----
        qkv = linear(atom_fea, trp["in_proj"]["w"], trp["in_proj"]["b"])
        qkv_pad = jnp.zeros((B, T, 3 * A), jnp.float32).at[batch_ids, pos_ids].set(qkv)
        att = attention(qkv_pad, mask_bias, A, nhead=2)
        att_real = att[batch_ids, pos_ids]               # back to N real rows
        x1, h_pre = tf_post1(att_real, atom_fea, trp, A)
        # TODO(synk): exact erf-GELU kept as XLA glue (no confirmed erf lowering
        # in Mosaic); fuse into tf_post2 once available.
        h = jax.nn.gelu(h_pre, approximate=False)
        atom_fea = tf_post2(h, x1, atom_fea, trp, params["norm2"][li], A)

    # ---------- readout ----------
    cry = jnp.zeros((B, A), jnp.float32).at[batch_ids].add(atom_fea)
    return readout(cry, params)


# ----------------------------------------------------------------------------
if __name__ == "__main__":
    A = 32          # node_feature_len
    E = 32          # edge_feature_len (== A, required by w_eij = Linear(3*E, E))
    n_layers = 2

    key = jax.random.PRNGKey(0)
    pkey, dkey = jax.random.split(key)
    params = init_params(pkey, A, E, n_layers)

    n_atoms = np.array([5, 7], dtype=np.int32)          # 2 crystals, 12 atoms total
    N = int(n_atoms.sum())

    # edges: each atom bonds to the next 2 atoms within its crystal
    src, dst = [], []
    off = 0
    for n in n_atoms:
        for i in range(int(n)):
            for d in (1, 2):
                src.append(off + i)
                dst.append(off + (i + d) % int(n))
        off += int(n)
    nbr_atoms = jnp.asarray(np.stack([src, dst], axis=1), dtype=jnp.int32)
    M = int(nbr_atoms.shape[0])

    k1, k2, k3, k4, k5, k6 = jax.random.split(dkey, 6)
    atom_fea_in = jax.random.randint(k1, (N, 1), 1, 95, dtype=jnp.int32)
    bonds_r = jax.random.uniform(k2, (M,), jnp.float32, 0.8, 4.5)

    n_bond_pairs_bond = np.full((M,), 2, dtype=np.int32)  # 2 bond pairs per bond
    L = int(n_bond_pairs_bond.sum())
    bond_pairs_indices = jax.random.randint(k3, (L, 2), 0, M, dtype=jnp.int32)
    triple_dist_ij = jax.random.uniform(k4, (L,), jnp.float32, 0.8, 3.2)
    triple_dist_ik = jax.random.uniform(k5, (L,), jnp.float32, 0.8, 3.2)
    triple_a_jik = jax.random.uniform(k6, (L,), jnp.float32, -1.0, 1.0)

    out = forward(params, atom_fea_in, bonds_r, n_atoms, triple_dist_ij,
                  triple_dist_ik, triple_a_jik, nbr_atoms,
                  jnp.asarray(n_bond_pairs_bond), bond_pairs_indices,
                  A, E, n_layers)
    out = jax.block_until_ready(out)
    assert out.shape == (len(n_atoms), 1)
    assert np.all(np.isfinite(np.asarray(out)))
    print("KERNEL_OK")
</pallas_src>

<mosaic_0001>
module attributes {stable_mosaic.version = 11 : i64} {
  func.func @_edge_init_kernel(%arg0: i32, %arg1: memref<8x32xf32, #tpu.memory_space<vmem>>, %arg2: memref<8x32xf32, #tpu.memory_space<vmem>>, %arg3: memref<8x16xf32, #tpu.memory_space<vmem>>, %arg4: memref<32x32xf32, #tpu.memory_space<vmem>>, %arg5: memref<32x32xf32, #tpu.memory_space<vmem>>, %arg6: memref<32x32xf32, #tpu.memory_space<vmem>>, %arg7: memref<1x32xf32, #tpu.memory_space<vmem>>, %arg8: memref<16x64xf32, #tpu.memory_space<vmem>>, %arg9: memref<1x64xf32, #tpu.memory_space<vmem>>, %arg10: memref<8x32xf32, #tpu.memory_space<vmem>>) attributes {dimension_semantics = [#tpu.dimension_semantics<parallel>], iteration_bounds = array<i64: 3>, scalar_prefetch = 0 : i64, scratch_operands = 0 : i64, tpu.core_type = #tpu.core_type<tc>, window_params = [{transform_indices = @transform_0, window_bounds = array<i64: 8, 32>}, {transform_indices = @transform_1, window_bounds = array<i64: 8, 32>}, {transform_indices = @transform_2, window_bounds = array<i64: 8, 16>}, {pipeline_mode = #tpu.pipeline_mode<synchronous>, transform_indices = @transform_3, window_bounds = array<i64: 32, 32>}, {pipeline_mode = #tpu.pipeline_mode<synchronous>, transform_indices = @transform_4, window_bounds = array<i64: 32, 32>}, {pipeline_mode = #tpu.pipeline_mode<synchronous>, transform_indices = @transform_5, window_bounds = array<i64: 32, 32>}, {pipeline_mode = #tpu.pipeline_mode<synchronous>, transform_indices = @transform_6, window_bounds = array<i64: 1, 32>}, {pipeline_mode = #tpu.pipeline_mode<synchronous>, transform_indices = @transform_7, window_bounds = array<i64: 16, 64>}, {pipeline_mode = #tpu.pipeline_mode<synchronous>, transform_indices = @transform_8, window_bounds = array<i64: 1, 64>}, {transform_indices = @transform_9, window_bounds = array<i64: 8, 32>}]} {
    %c0 = arith.constant 0 : index
    %c0_0 = arith.constant 0 : index
    %0 = vector.load %arg3[%c0, %c0_0] : memref<8x16xf32, #tpu.memory_space<vmem>>, vector<8x16xf32>
    %c0_1 = arith.constant 0 : index
    %c0_2 = arith.constant 0 : index
    %1 = vector.load %arg8[%c0_1, %c0_2] : memref<16x64xf32, #tpu.memory_space<vmem>>, vector<16x64xf32>
    %cst = arith.constant dense<0.000000e+00> : vector<8x64xf32>
    %2 = tpu.matmul %0, %1, %cst {dimension_numbers = #tpu.dot_dimension_numbers<[1], [0], [0], [1], [0, 0, 1, 1], [], []>} : vector<8x16xf32>, vector<16x64xf32>, vector<8x64xf32> -> vector<8x64xf32>
    %c0_3 = arith.constant 0 : index
    %c0_4 = arith.constant 0 : index
    %3 = vector.load %arg9[%c0_3, %c0_4] : memref<1x64xf32, #tpu.memory_space<vmem>>, vector<1x64xf32>
    %4 = vector.broadcast %3 : vector<1x64xf32> to vector<8x64xf32>
    %5 = arith.addf %2, %4 : vector<8x64xf32>
    %6 = vector.extract_strided_slice %5 {offsets = [0, 0], sizes = [8, 32], strides = [1, 1]} : vector<8x64xf32> to vector<8x32xf32>
    %7 = vector.extract_strided_slice %5 {offsets = [0, 32], sizes = [8, 32], strides = [1, 1]} : vector<8x64xf32> to vector<8x32xf32>
    %c0_5 = arith.constant 0 : index
    %c0_6 = arith.constant 0 : index
    %8 = vector.load %arg1[%c0_5, %c0_6] : memref<8x32xf32, #tpu.memory_space<vmem>>, vector<8x32xf32>
    %c0_7 = arith.constant 0 : index
    %c0_8 = arith.constant 0 : index
    %9 = vector.load %arg4[%c0_7, %c0_8] : memref<32x32xf32, #tpu.memory_space<vmem>>, vector<32x32xf32>
    %cst_9 = arith.constant dense<0.000000e+00> : vector<8x32xf32>
    %10 = tpu.matmul %8, %9, %cst_9 {dimension_numbers = #tpu.dot_dimension_numbers<[1], [0], [0], [1], [0, 0, 1, 1], [], []>} : vector<8x32xf32>, vector<32x32xf32>, vector<8x32xf32> -> vector<8x32xf32>
    %c0_10 = arith.constant 0 : index
    %c0_11 = arith.constant 0 : index
    %11 = vector.load %arg2[%c0_10, %c0_11] : memref<8x32xf32, #tpu.memory_space<vmem>>, vector<8x32xf32>
    %c0_12 = arith.constant 0 : index
    %c0_13 = arith.constant 0 : index
    %12 = vector.load %arg5[%c0_12, %c0_13] : memref<32x32xf32, #tpu.memory_space<vmem>>, vector<32x32xf32>
    %cst_14 = arith.constant dense<0.000000e+00> : vector<8x32xf32>
    %13 = tpu.matmul %11, %12, %cst_14 {dimension_numbers = #tpu.dot_dimension_numbers<[1], [0], [0], [1], [0, 0, 1, 1], [], []>} : vector<8x32xf32>, vector<32x32xf32>, vector<8x32xf32> -> vector<8x32xf32>
    %14 = arith.addf %10, %13 : vector<8x32xf32>
    %c0_15 = arith.constant 0 : index
    %c0_16 = arith.constant 0 : index
    %15 = vector.load %arg6[%c0_15, %c0_16] : memref<32x32xf32, #tpu.memory_space<vmem>>, vector<32x32xf32>
    %cst_17 = arith.constant dense<0.000000e+00> : vector<8x32xf32>
    %16 = tpu.matmul %6, %15, %cst_17 {dimension_numbers = #tpu.dot_dimension_numbers<[1], [0], [0], [1], [0, 0, 1, 1], [], []>} : vector<8x32xf32>, vector<32x32xf32>, vector<8x32xf32> -> vector<8x32xf32>
    %17 = arith.addf %14, %16 : vector<8x32xf32>
    %c0_18 = arith.constant 0 : index
    %c0_19 = arith.constant 0 : index
    %18 = vector.load %arg7[%c0_18, %c0_19] : memref<1x32xf32, #tpu.memory_space<vmem>>, vector<1x32xf32>
    %19 = vector.broadcast %18 : vector<1x32xf32> to vector<8x32xf32>
    %20 = arith.addf %17, %19 : vector<8x32xf32>
    %21 = arith.mulf %20, %7 : vector<8x32xf32>
    %c0_20 = arith.constant 0 : index
    %c0_21 = arith.constant 0 : index
    %22 = vector.load %arg10[%c0_20, %c0_21] : memref<8x32xf32, #tpu.memory_space<vmem>>, vector<8x32xf32>
    tpu.vector_store %arg10[%c0_20, %c0_21], %21 {strides = array<i32>} : memref<8x32xf32, #tpu.memory_space<vmem>>, vector<8x32xf32>,
    return
  }
  func.func @transform_0(%arg0: i32) -> (i32, i32) {
    %c0_i32 = arith.constant 0 : i32
    %c0_i32_0 = arith.constant 0 : i32
    return %arg0, %c0_i32 : i32, i32
  }
  func.func @transform_1(%arg0: i32) -> (i32, i32) {
    %c0_i32 = arith.constant 0 : i32
    %c0_i32_0 = arith.constant 0 : i32
    return %arg0, %c0_i32 : i32, i32
  }
  func.func @transform_2(%arg0: i32) -> (i32, i32) {
    %c0_i32 = arith.constant 0 : i32
    %c0_i32_0 = arith.constant 0 : i32
    return %arg0, %c0_i32 : i32, i32
  }
  func.func @transform_3(%arg0: i32) -> (i32, i32) {
    %c0_i32 = arith.constant 0 : i32
    %c0_i32_0 = arith.constant 0 : i32
    %c0_i32_1 = arith.constant 0 : i32
    return %c0_i32, %c0_i32_0 : i32, i32
  }
  func.func @transform_4(%arg0: i32) -> (i32, i32) {
    %c0_i32 = arith.constant 0 : i32
    %c0_i32_0 = arith.constant 0 : i32
    %c0_i32_1 = arith.constant 0 : i32
    return %c0_i32, %c0_i32_0 : i32, i32
  }
  func.func @transform_5(%arg0: i32) -> (i32, i32) {
    %c0_i32 = arith.constant 0 : i32
    %c0_i32_0 = arith.constant 0 : i32
    %c0_i32_1 = arith.constant 0 : i32
    return %c0_i32, %c0_i32_0 : i32, i32
  }
  func.func @transform_6(%arg0: i32) -> (i32, i32) {
    %c0_i32 = arith.constant 0 : i32
    %c0_i32_0 = arith.constant 0 : i32
    %c0_i32_1 = arith.constant 0 : i32
    return %c0_i32, %c0_i32_0 : i32, i32
  }
  func.func @transform_7(%arg0: i32) -> (i32, i32) {
    %c0_i32 = arith.constant 0 : i32
    %c0_i32_0 = arith.constant 0 : i32
    %c0_i32_1 = arith.constant 0 : i32
    return %c0_i32, %c0_i32_0 : i32, i32
  }
  func.func @transform_8(%arg0: i32) -> (i32, i32) {
    %c0_i32 = arith.constant 0 : i32
    %c0_i32_0 = arith.constant 0 : i32
    %c0_i32_1 = arith.constant 0 : i32
    return %c0_i32, %c0_i32_0 : i32, i32
  }
  func.func @transform_9(%arg0: i32) -> (i32, i32) {
    %c0_i32 = arith.constant 0 : i32
    %c0_i32_0 = arith.constant 0 : i32
    return %arg0, %c0_i32 : i32, i32
  }
}

</mosaic_0001>

<llo_original>
// kernel: tpu_custom_call.1
$region0: #{tpu_custom_call.1}
  #allocation0 [shape = 'u32[]', space=smem, size = 0x4, offset = 0x4, fixed_abs, tag = 'smem constant byte address 0x4 - core index']
  #allocation1 [shape = 'u32[72,128]{1,0:T(1,128)}', space=vmem, size = 0x9000, scoped, tag = 'internal scratch']
  %s0 = inlined_call_operand.hbm [shape: f32[24,32], index: 0, kind: input, shape index: {}]
  %s1 = inlined_call_operand.hbm [shape: f32[24,32], index: 1, kind: input, shape index: {}]
  %s2 = inlined_call_operand.vmem [shape: f32[24,16], index: 2, kind: input, shape index: {}]
  %s3 = inlined_call_operand.vmem [shape: f32[32,32], index: 3, kind: input, shape index: {}]
  %s4 = inlined_call_operand.hbm [shape: f32[32,32], index: 4, kind: input, shape index: {}]
  %s5 = inlined_call_operand.hbm [shape: f32[32,32], index: 5, kind: input, shape index: {}]
  %s6 = inlined_call_operand.vmem [shape: f32[1,32], index: 6, kind: input, shape index: {}]
  %s7 = inlined_call_operand.hbm [shape: f32[16,64], index: 7, kind: input, shape index: {}]
  %s8 = inlined_call_operand.vmem [shape: f32[1,64], index: 8, kind: input, shape index: {}]
  %s9 = inlined_call_operand.hbm [shape: f32[24,32], index: 9, kind: output, shape index: {}]
  %s10 = sld [smem:[#allocation0]]
  $region89: #{tpu_custom_call.1} parent=0
    _
  %s12 = ssub.s32 1, %s10
  %s13 = scalar_select 0, %s12, %s10
  $region1: #{tpu_custom_call.1} parent=0
    #allocation2 [shape = 'u8[8192]{0}', space=vmem, size = 0x2000, scoped, tag = 'input window, operand 0']
    #allocation3 [shape = 's32[2]{0}', space=sflag, size = 0x8, scoped, tag = 'scoped memory for tpu_custom_call.1']
    #allocation4 [shape = 's32[2]{0}', space=sflag, size = 0x8, scoped, tag = 'scoped memory for tpu_custom_call.1']
    #allocation5 [shape = 'u8[8192]{0}', space=vmem, size = 0x2000, scoped, tag = 'input window, operand 1']
    #allocation6 [shape = 's32[2]{0}', space=sflag, size = 0x8, scoped, tag = 'scoped memory for tpu_custom_call.1']
    #allocation7 [shape = 'u8[16384]{0}', space=vmem, size = 0x4000, scoped, tag = 'input window, operand 4, single buffered']
    #allocation8 [shape = 'u8[16384]{0}', space=vmem, size = 0x4000, scoped, tag = 'input window, operand 5, single buffered']
    #allocation9 [shape = 's32[1]{0}', space=sflag, size = 0x4, scoped, tag = 'scoped memory for tpu_custom_call.1']
    #allocation10 [shape = 'u8[8192]{0}', space=vmem, size = 0x2000, scoped, tag = 'input window, operand 7, single buffered']
    #allocation11 [shape = 'u8[8192]{0}', space=vmem, size = 0x2000, scoped, tag = 'output window, operand 0']
    %14 = vsyncpa [#allocation3], 0
    %s15 = scalar_lea.sflag [#allocation3], 1
    %16 = vsyncpa %s15, 0
    %17 = vsyncpa [#allocation6], 0
    %s18 = scalar_lea.sflag [#allocation6], 1
    %19 = vsyncpa %s18, 0
    %20 = vsyncpa [#allocation9], 0
    %21 = vsyncpa [#allocation4], 0
    %s22 = scalar_lea.sflag [#allocation4], 1
    %23 = vsyncpa %s22, 0
    loop: start=0, step=1, limit=5
    $region2: #{tpu_custom_call.1} parent=1 // loop_pre_header
      _
    $region3: #{tpu_custom_call.1} parent=1 // loop_header
      %s25 = sphi 0, %s29
      %p26 = scmp.ge.s32.totalorder %s25, 5
      %s35 = sphi 0, %s37
      %s38 = sphi 0, %s35
      %s39 = sphi 0, %s38
      %s55 = sphi 0, %s39
      %s61 = sphi 0, %s63
      %s64 = sphi 0, %s61
      %s65 = sphi 0, %s64
      %s81 = sphi 0, %s65
      %s87 = sphi 0, %s89
      %s90 = sphi 0, %s87
      %s91 = sphi 0, %s90
      %s107 = sphi 0, %s91
      %s111 = sphi 0, %s111
      %s113 = sphi 0, %s111
      %s114 = sphi 0, %s113
      %s128 = sphi 0, %s114
      %s132 = sphi 0, %s132
      %s134 = sphi 0, %s132
      %s135 = sphi 0, %s134
      %s149 = sphi 0, %s135
      %s153 = sphi 0, %s153
      %s155 = sphi 0, %s153
      %s156 = sphi 0, %s155
      %s170 = sphi 0, %s156
      %s174 = sphi 0, %s174
      %s176 = sphi 0, %s174
      %s177 = sphi 0, %s176
      %s191 = sphi 0, %s177
      %s195 = sphi 0, %s195
      %s197 = sphi 0, %s195
      %s198 = sphi 0, %s197
      %s212 = sphi 0, %s198
      %s216 = sphi 0, %s216
      %s218 = sphi 0, %s216
      %s219 = sphi 0, %s218
      %s233 = sphi 0, %s219
      %s239 = sphi 0, %s241
      %s242 = sphi 0, %s239
      %s243 = sphi 0, %s242
      %s259 = sphi 0, %s243
    $region4: #{tpu_custom_call.1} parent=1 // loop_header_branch
      %28 = sbr.rel (%p26) target = $region8
    $region5: #{tpu_custom_call.1} parent=1 // loop_body
      %s30 = ssub.s32 %s25, 1
      %s31 = ssub.s32 %s25, 2
      %s32 = sadd.s32 %s25, 1
      %s33 = ssub.s32 %s25, %s32
      %p34 = scmp.eq.s32.totalorder %s33, 0
      %s36 = sadd.s32 %s35, 1
      %s37 = scalar_select %p34, %s35, %s36
      %p40 = pneg %p34
      %p41 = scmp.eq.s32.totalorder %s25, 2
      %p42 = por %p40, %p41
      %p43 = scmp.ne.s32.totalorder %s35, %s38
      %p44 = scmp.eq.s32.totalorder %s25, 0
      %p45 = por %p43, %p44
      %p46 = scmp.ne.s32.totalorder %s35, %s38
      %p47 = scmp.eq.s32.totalorder %s30, 2
      %p48 = por %p46, %p47
      %p49 = scmp.ne.s32.totalorder %s38, %s39
      %p50 = scmp.eq.s32.totalorder %s30, 0
      %p51 = por %p49, %p50
      %p52 = scmp.ne.s32.totalorder %s38, %s39
      %p53 = scmp.eq.s32.totalorder %s31, 2
      %p54 = por %p52, %p53
      %p56 = scmp.ne.s32.totalorder %s39, %s55
      %p57 = scmp.eq.s32.totalorder %s31, 0
      %p58 = por %p56, %p57
      %s59 = ssub.s32 %s25, %s32
      %p60 = scmp.eq.s32.totalorder %s59, 0
      %s62 = sadd.s32 %s61, 1
      %s63 = scalar_select %p60, %s61, %s62
      %p66 = pneg %p60
      %p67 = scmp.eq.s32.totalorder %s25, 2
      %p68 = por %p66, %p67
      %p69 = scmp.ne.s32.totalorder %s61, %s64
      %p70 = scmp.eq.s32.totalorder %s25, 0
      %p71 = por %p69, %p70
      %p72 = scmp.ne.s32.totalorder %s61, %s64
      %p73 = scmp.eq.s32.totalorder %s30, 2
      %p74 = por %p72, %p73
      %p75 = scmp.ne.s32.totalorder %s64, %s65
      %p76 = scmp.eq.s32.totalorder %s30, 0
      %p77 = por %p75, %p76
      %p78 = scmp.ne.s32.totalorder %s64, %s65
      %p79 = scmp.eq.s32.totalorder %s31, 2
      %p80 = por %p78, %p79
      %p82 = scmp.ne.s32.totalorder %s65, %s81
      %p83 = scmp.eq.s32.totalorder %s31, 0
      %p84 = por %p82, %p83
      %s85 = ssub.s32 %s25, %s32
      %p86 = scmp.eq.s32.totalorder %s85, 0
      %s88 = sadd.s32 %s87, 1
      %s89 = scalar_select %p86, %s87, %s88
      %p92 = pneg %p86
      %p93 = scmp.eq.s32.totalorder %s25, 2
      %p94 = por %p92, %p93
      %p95 = scmp.ne.s32.totalorder %s87, %s90
      %p96 = scmp.eq.s32.totalorder %s25, 0
      %p97 = por %p95, %p96
      %p98 = scmp.ne.s32.totalorder %s87, %s90
      %p99 = scmp.eq.s32.totalorder %s30, 2
      %p100 = por %p98, %p99
      %p101 = scmp.ne.s32.totalorder %s90, %s91
      %p102 = scmp.eq.s32.totalorder %s30, 0
      %p103 = por %p101, %p102
      %p104 = scmp.ne.s32.totalorder %s90, %s91
      %p105 = scmp.eq.s32.totalorder %s31, 2
      %p106 = por %p104, %p105
      %p108 = scmp.ne.s32.totalorder %s91, %s107
      %p109 = scmp.eq.s32.totalorder %s31, 0
      %p110 = por %p108, %p109
      %s112 = sadd.s32 %s111, 1
      %p115 = scmp.eq.s32.totalorder %s25, 2
      %p116 = scmp.ne.s32.totalorder %s111, %s113
      %p117 = scmp.eq.s32.totalorder %s25, 0
      %p118 = por %p116, %p117
      %p119 = scmp.ne.s32.totalorder %s111, %s113
      %p120 = scmp.eq.s32.totalorder %s30, 2
      %p121 = por %p119, %p120
      %p122 = scmp.ne.s32.totalorder %s113, %s114
      %p123 = scmp.eq.s32.totalorder %s30, 0
      %p124 = por %p122, %p123
      %p125 = scmp.ne.s32.totalorder %s113, %s114
      %p126 = scmp.eq.s32.totalorder %s31, 2
      %p127 = por %p125, %p126
      %p129 = scmp.ne.s32.totalorder %s114, %s128
      %p130 = scmp.eq.s32.totalorder %s31, 0
      %p131 = por %p129, %p130
      %s133 = sadd.s32 %s132, 1
      %p136 = scmp.eq.s32.totalorder %s25, 2
      %p137 = scmp.ne.s32.totalorder %s132, %s134
      %p138 = scmp.eq.s32.totalorder %s25, 0
      %p139 = por %p137, %p138
      %p140 = scmp.ne.s32.totalorder %s132, %s134
      %p141 = scmp.eq.s32.totalorder %s30, 2
      %p142 = por %p140, %p141
      %p143 = scmp.ne.s32.totalorder %s134, %s135
      %p144 = scmp.eq.s32.totalorder %s30, 0
      %p145 = por %p143, %p144
      %p146 = scmp.ne.s32.totalorder %s134, %s135
      %p147 = scmp.eq.s32.totalorder %s31, 2
      %p148 = por %p146, %p147
      %p150 = scmp.ne.s32.totalorder %s135, %s149
      %p151 = scmp.eq.s32.totalorder %s31, 0
      %p152 = por %p150, %p151
      %s154 = sadd.s32 %s153, 1
      %p157 = scmp.eq.s32.totalorder %s25, 2
      %p158 = scmp.ne.s32.totalorder %s153, %s155
      %p159 = scmp.eq.s32.totalorder %s25, 0
      %p160 = por %p158, %p159
      %p161 = scmp.ne.s32.totalorder %s153, %s155
      %p162 = scmp.eq.s32.totalorder %s30, 2
      %p163 = por %p161, %p162
      %p164 = scmp.ne.s32.totalorder %s155, %s156
      %p165 = scmp.eq.s32.totalorder %s30, 0
      %p166 = por %p164, %p165
      %p167 = scmp.ne.s32.totalorder %s155, %s156
      %p168 = scmp.eq.s32.totalorder %s31, 2
      %p169 = por %p167, %p168
      %p171 = scmp.ne.s32.totalorder %s156, %s170
      %p172 = scmp.eq.s32.totalorder %s31, 0
      %p173 = por %p171, %p172
      %s175 = sadd.s32 %s174, 1
      %p178 = scmp.eq.s32.totalorder %s25, 2
      %p179 = scmp.ne.s32.totalorder %s174, %s176
      %p180 = scmp.eq.s32.totalorder %s25, 0
      %p181 = por %p179, %p180
      %p182 = scmp.ne.s32.totalorder %s174, %s176
      %p183 = scmp.eq.s32.totalorder %s30, 2
      %p184 = por %p182, %p183
      %p185 = scmp.ne.s32.totalorder %s176, %s177
      %p186 = scmp.eq.s32.totalorder %s30, 0
      %p187 = por %p185, %p186
      %p188 = scmp.ne.s32.totalorder %s176, %s177
      %p189 = scmp.eq.s32.totalorder %s31, 2
      %p190 = por %p188, %p189
      %p192 = scmp.ne.s32.totalorder %s177, %s191
      %p193 = scmp.eq.s32.totalorder %s31, 0
      %p194 = por %p192, %p193
      %s196 = sadd.s32 %s195, 1
      %p199 = scmp.eq.s32.totalorder %s25, 2
      %p200 = scmp.ne.s32.totalorder %s195, %s197
      %p201 = scmp.eq.s32.totalorder %s25, 0
      %p202 = por %p200, %p201
      %p203 = scmp.ne.s32.totalorder %s195, %s197
      %p204 = scmp.eq.s32.totalorder %s30, 2
      %p205 = por %p203, %p204
      %p206 = scmp.ne.s32.totalorder %s197, %s198
      %p207 = scmp.eq.s32.totalorder %s30, 0
      %p208 = por %p206, %p207
      %p209 = scmp.ne.s32.totalorder %s197, %s198
      %p210 = scmp.eq.s32.totalorder %s31, 2
      %p211 = por %p209, %p210
      %p213 = scmp.ne.s32.totalorder %s198, %s212
      %p214 = scmp.eq.s32.totalorder %s31, 0
      %p215 = por %p213, %p214
      %s217 = sadd.s32 %s216, 1
      %p220 = scmp.eq.s32.totalorder %s25, 2
      %p221 = scmp.ne.s32.totalorder %s216, %s218
      %p222 = scmp.eq.s32.totalorder %s25, 0
      %p223 = por %p221, %p222
      %p224 = scmp.ne.s32.totalorder %s216, %s218
      %p225 = scmp.eq.s32.totalorder %s30, 2
      %p226 = por %p224, %p225
      %p227 = scmp.ne.s32.totalorder %s218, %s219
      %p228 = scmp.eq.s32.totalorder %s30, 0
      %p229 = por %p227, %p228
      %p230 = scmp.ne.s32.totalorder %s218, %s219
      %p231 = scmp.eq.s32.totalorder %s31, 2
      %p232 = por %p230, %p231
      %p234 = scmp.ne.s32.totalorder %s219, %s233
      %p235 = scmp.eq.s32.totalorder %s31, 0
      %p236 = por %p234, %p235
      %s237 = ssub.s32 %s25, %s32
      %p238 = scmp.eq.s32.totalorder %s237, 0
      %s240 = sadd.s32 %s239, 1
      %s241 = scalar_select %p238, %s239, %s240
      %p244 = pneg %p238
      %p245 = scmp.eq.s32.totalorder %s25, 2
      %p246 = por %p244, %p245
      %p247 = scmp.ne.s32.totalorder %s239, %s242
      %p248 = scmp.eq.s32.totalorder %s25, 0
      %p249 = por %p247, %p248
      %p250 = scmp.ne.s32.totalorder %s239, %s242
      %p251 = scmp.eq.s32.totalorder %s30, 2
      %p252 = por %p250, %p251
      %p253 = scmp.ne.s32.totalorder %s242, %s243
      %p254 = scmp.eq.s32.totalorder %s30, 0
      %p255 = por %p253, %p254
      %p256 = scmp.ne.s32.totalorder %s242, %s243
      %p257 = scmp.eq.s32.totalorder %s31, 2
      %p258 = por %p256, %p257
      %p260 = scmp.ne.s32.totalorder %s243, %s259
      %p261 = scmp.eq.s32.totalorder %s31, 0
      %p262 = por %p260, %p261
      %p263 = scmp.le.s32.totalorder 1, %s25
      %p264 = scmp.lt.s32.totalorder %s25, 4
      %p265 = pnand %p263, %p264
      %p266 = pneg %p265
      // Predicated region
      $region9: #{tpu_custom_call.1} parent=5 // pred_check
        _
      $region10: #{tpu_custom_call.1} parent=5 // pred_check_branch
        %268 = sbr.rel (%p265) target = $region12
      $region11: #{tpu_custom_call.1} parent=5 // pred_region
        %s269 = ssub.s32 %s25, 1
        // Predicated region
        $region13: #{tpu_custom_call.1} parent=11 // pred_check
          %p270 = pneg %p124
        $region14: #{tpu_custom_call.1} parent=11 // pred_check_branch
          %272 = sbr.rel (%p270) target = $region16
        $region15: #{tpu_custom_call.1} parent=11 // pred_region
          _
        $region16: #{tpu_custom_call.1} parent=11 // pred_fallthru
          _
        // Predicated region
        $region17: #{tpu_custom_call.1} parent=11 // pred_check
          %p273 = pneg %p145
        $region18: #{tpu_custom_call.1} parent=11 // pred_check_branch
          %275 = sbr.rel (%p273) target = $region20
        $region19: #{tpu_custom_call.1} parent=11 // pred_region
          %277 = vsyncadd [#allocation6], 0
          %s278 = sshll.u32 %s4, 4
          %s279 = int_to_ptr.hbm [resolvable:$true] %s278
          %s280 = sshll.u32 [#allocation7], 4
          %s281 = int_to_ptr.vmem [resolvable:$true] %s280
          %286 = dma.hbm_to_vmem [thread:$0]  %s279, 512, %s281, [#allocation6], 128, 128, 8
        $region20: #{tpu_custom_call.1} parent=11 // pred_fallthru
          _
        // Predicated region
        $region21: #{tpu_custom_call.1} parent=11 // pred_check
          %p287 = pneg %p166
        $region22: #{tpu_custom_call.1} parent=11 // pred_check_branch
          %289 = sbr.rel (%p287) target = $region24
        $region23: #{tpu_custom_call.1} parent=11 // pred_region
          %291 = vsyncadd [#allocation9], 0
          %s292 = sshll.u32 %s5, 4
          %s293 = int_to_ptr.hbm [resolvable:$true] %s292
          %s294 = sshll.u32 [#allocation8], 4
          %s295 = int_to_ptr.vmem [resolvable:$true] %s294
          %300 = dma.hbm_to_vmem [thread:$0]  %s293, 512, %s295, [#allocation9], 128, 128, 8
        $region24: #{tpu_custom_call.1} parent=11 // pred_fallthru
          _
        // Predicated region
        $region25: #{tpu_custom_call.1} parent=11 // pred_check
          %p301 = pneg %p187
        $region26: #{tpu_custom_call.1} parent=11 // pred_check_branch
          %303 = sbr.rel (%p301) target = $region28
        $region27: #{tpu_custom_call.1} parent=11 // pred_region
          _
        $region28: #{tpu_custom_call.1} parent=11 // pred_fallthru
          _
        // Predicated region
        $region29: #{tpu_custom_call.1} parent=11 // pred_check
          %p304 = pneg %p208
        $region30: #{tpu_custom_call.1} parent=11 // pred_check_branch
          %306 = sbr.rel (%p304) target = $region32
        $region31: #{tpu_custom_call.1} parent=11 // pred_region
          %308 = vsyncadd [#allocation9], 0
          %s309 = sshll.u32 %s7, 4
          %s310 = int_to_ptr.hbm [resolvable:$true] %s309
          %s311 = sshll.u32 [#allocation10], 4
          %s312 = int_to_ptr.vmem [resolvable:$true] %s311
          %317 = dma.hbm_to_vmem [thread:$0]  %s310, 256, %s312, [#allocation9], 128, 128, 8
        $region32: #{tpu_custom_call.1} parent=11 // pred_fallthru
          _
        // Predicated region
        $region33: #{tpu_custom_call.1} parent=11 // pred_check
          %p318 = pneg %p229
        $region34: #{tpu_custom_call.1} parent=11 // pred_check_branch
          %320 = sbr.rel (%p318) target = $region36
        $region35: #{tpu_custom_call.1} parent=11 // pred_region
          _
        $region36: #{tpu_custom_call.1} parent=11 // pred_fallthru
          _
      $region12: #{tpu_custom_call.1} parent=5 // pred_fallthru
        _
      %p321 = scmp.lt.s32.totalorder %s25, 3
      // Predicated region
      $region37: #{tpu_custom_call.1} parent=5 // pred_check
        %p322 = pneg %p321
      $region38: #{tpu_custom_call.1} parent=5 // pred_check_branch
        %324 = sbr.rel (%p322) target = $region40
      $region39: #{tpu_custom_call.1} parent=5 // pred_region
        // Predicated region
        $region41: #{tpu_custom_call.1} parent=39 // pred_check
          %p325 = pneg %p45
        $region42: #{tpu_custom_call.1} parent=39 // pred_check_branch
          %327 = sbr.rel (%p325) target = $region44
        $region43: #{tpu_custom_call.1} parent=39 // pred_region
          %s328 = sand.u32 %s35, 1
          %s329 = scalar_lea.sflag [#allocation3], %s328
          %s330 = sand.u32 %s35, 1
          %s331 = smul.addr %s330, 8
          %s332 = scalar_lea.vmem [#allocation2], %s331
          %334 = vsyncadd %s329, 0
          %s335 = smul.addr %s25, 8
          %s336 = scalar_lea.hbm %s0, %s335
          %s338 = sshll.u32 %s336, 4
          %s339 = int_to_ptr.hbm [resolvable:$true] %s338
          %s340 = sshll.u32 %s332, 4
          %s341 = int_to_ptr.vmem [resolvable:$true] %s340
          %343 = dma.hbm_to_vmem [thread:$0]  %s339, 128, %s341, %s329
        $region44: #{tpu_custom_call.1} parent=39 // pred_fallthru
          _
        // Predicated region
        $region45: #{tpu_custom_call.1} parent=39 // pred_check
          %p344 = pneg %p71
        $region46: #{tpu_custom_call.1} parent=39 // pred_check_branch
          %346 = sbr.rel (%p344) target = $region48
        $region47: #{tpu_custom_call.1} parent=39 // pred_region
          %s347 = sand.u32 %s25, 1
          %s348 = scalar_lea.sflag [#allocation6], %s347
          %s349 = sand.u32 %s61, 1
          %s350 = smul.addr %s349, 8
          %s351 = scalar_lea.vmem [#allocation5], %s350
          %353 = vsyncadd %s348, 0
          %s354 = smul.addr %s25, 8
          %s355 = scalar_lea.hbm %s1, %s354
          %s357 = sshll.u32 %s355, 4
          %s358 = int_to_ptr.hbm [resolvable:$true] %s357
          %s359 = sshll.u32 %s351, 4
          %s360 = int_to_ptr.vmem [resolvable:$true] %s359
          %362 = dma.hbm_to_vmem [thread:$0]  %s358, 128, %s360, %s348
        $region48: #{tpu_custom_call.1} parent=39 // pred_fallthru
          _
        // Predicated region
        $region49: #{tpu_custom_call.1} parent=39 // pred_check
          %p363 = pneg %p97
        $region50: #{tpu_custom_call.1} parent=39 // pred_check_branch
          %365 = sbr.rel (%p363) target = $region52
        $region51: #{tpu_custom_call.1} parent=39 // pred_region
          %p366 = scmp.lt.s32.totalorder %s25, 2
          %s367 = scalar_select %p366, %s25, 2
          %s368 = smul.addr %s367, 8
          %s369 = scalar_lea.vmem %s2, %s368
        $region52: #{tpu_custom_call.1} parent=39 // pred_fallthru
          _
      $region40: #{tpu_custom_call.1} parent=5 // pred_fallthru
        _
      %p370 = scmp.le.s32.totalorder 1, %s25
      %p371 = scmp.lt.s32.totalorder %s25, 4
      %p372 = pnand %p370, %p371
      %p373 = pneg %p372
      // Predicated region
      $region53: #{tpu_custom_call.1} parent=5 // pred_check
        _
      $region54: #{tpu_custom_call.1} parent=5 // pred_check_branch
        %375 = sbr.rel (%p372) target = $region56
      $region55: #{tpu_custom_call.1} parent=5 // pred_region
        %s376 = ssub.s32 %s25, 1
        %s377 = sand.u32 %s38, 1
        %s378 = scalar_lea.sflag [#allocation3], %s377
        %s379 = sand.u32 %s38, 1
        %s380 = smul.addr %s379, 8
        %s381 = scalar_lea.vmem [#allocation2], %s380
        // Predicated region
        $region57: #{tpu_custom_call.1} parent=55 // pred_check
          %p382 = pneg %p51
        $region58: #{tpu_custom_call.1} parent=55 // pred_check_branch
          %384 = sbr.rel (%p382) target = $region60
        $region59: #{tpu_custom_call.1} parent=55 // pred_region
          %386 = dma.done %s378, 128
        $region60: #{tpu_custom_call.1} parent=55 // pred_fallthru
          _
        %s387 = sand.u32 %s30, 1
        %s388 = scalar_lea.sflag [#allocation6], %s387
        %s389 = sand.u32 %s64, 1
        %s390 = smul.addr %s389, 8
        %s391 = scalar_lea.vmem [#allocation5], %s390
        // Predicated region
        $region61: #{tpu_custom_call.1} parent=55 // pred_check
          %p392 = pneg %p77
        $region62: #{tpu_custom_call.1} parent=55 // pred_check_branch
          %394 = sbr.rel (%p392) target = $region64
        $region63: #{tpu_custom_call.1} parent=55 // pred_region
          %396 = dma.done %s388, 128
        $region64: #{tpu_custom_call.1} parent=55 // pred_fallthru
          _
        // Predicated region
        $region65: #{tpu_custom_call.1} parent=55 // pred_check
          %p397 = pneg %p145
        $region66: #{tpu_custom_call.1} parent=55 // pred_check_branch
          %399 = sbr.rel (%p397) target = $region68
        $region67: #{tpu_custom_call.1} parent=55 // pred_region
          %401 = dma.done [#allocation6], 512
        $region68: #{tpu_custom_call.1} parent=55 // pred_fallthru
          _
        // Predicated region
        $region69: #{tpu_custom_call.1} parent=55 // pred_check
          %p402 = pneg %p166
        $region70: #{tpu_custom_call.1} parent=55 // pred_check_branch
          %404 = sbr.rel (%p402) target = $region72
        $region71: #{tpu_custom_call.1} parent=55 // pred_region
          %406 = dma.done [#allocation9], 512
        $region72: #{tpu_custom_call.1} parent=55 // pred_fallthru
          _
        // Predicated region
        $region73: #{tpu_custom_call.1} parent=55 // pred_check
          %p407 = pneg %p208
        $region74: #{tpu_custom_call.1} parent=55 // pred_check_branch
          %409 = sbr.rel (%p407) target = $region76
        $region75: #{tpu_custom_call.1} parent=55 // pred_region
          %411 = dma.done [#allocation9], 256
        $region76: #{tpu_custom_call.1} parent=55 // pred_fallthru
          _
        %s412 = sand.u32 %s38, 1
        %s413 = scalar_lea.sflag [#allocation3], %s412
        %s414 = sand.u32 %s38, 1
        %s415 = smul.addr %s414, 8
        %s416 = scalar_lea.vmem [#allocation2], %s415
        %p417 = pneg %p51
        %p418 = pneg %p48
        %s419 = sand.u32 %s30, 1
        %s420 = scalar_lea.sflag [#allocation6], %s419
        %s421 = sand.u32 %s64, 1
        %s422 = smul.addr %s421, 8
        %s423 = scalar_lea.vmem [#allocation5], %s422
        %p424 = pneg %p77
        %p425 = pneg %p74
        %p426 = scmp.lt.s32.totalorder %s30, 2
        %s427 = scalar_select %p426, %s30, 2
        %s428 = smul.addr %s427, 8
        %s429 = scalar_lea.vmem %s2, %s428
        %p430 = pneg %p103
        %p431 = pneg %p100
        %p432 = pneg %p124
        %p433 = pneg %p121
        %p434 = pneg %p145
        %p435 = pneg %p142
        %p436 = pneg %p166
        %p437 = pneg %p163
        %p438 = pneg %p187
        %p439 = pneg %p184
        %p440 = pneg %p208
        %p441 = pneg %p205
        %p442 = pneg %p229
        %p443 = pneg %p226
        %p444 = pneg %p255
        %p445 = pneg %p252
        %s446 = sand.u32 %s242, 1
        %s447 = scalar_lea.sflag [#allocation4], %s446
        %s448 = sand.u32 %s242, 1
        %s449 = smul.addr %s448, 8
        %s450 = scalar_lea.vmem [#allocation11], %s449
        %p451 = scmp.lt.s32.totalorder %s30, 2
        %s452 = scalar_select %p451, %s30, 2
        %s453 = smul.addr %s452, 8
        %s454 = scalar_lea.vmem %s2, %s453
        %v455 = vld [vmem:[%s454] sm:$0xff]
        %v456 = vld [vmem:[#allocation10] sm:$0xff]
        %v457 = vld [vmem:[#allocation10 + $0x8] sm:$0xff]
        %v458 = vld [vmem:[%s8] sm:$0x1]
        %v460 = vperm.slane %v458, 0
        %vm462 = vcmask 130048
        %v464 = vsel %vm462, %v455, 0
        %466 = vmatpush.msra.mxu0 0.0
        %467 = vmatpush.msra.mxu0 0.0
        %468 = vmatpush.msra.mxu0 0.0
        %469 = vmatpush.msra.mxu0 0.0
        %470 = vmatpush.msra.mxu0 0.0
        %471 = vmatpush.msra.mxu0 0.0
        %472 = vmatpush.msra.mxu0 0.0
        %473 = vmatpush.msra.mxu0 0.0
        %474 = vmatpush.msra.mxu0 0.0
        %475 = vmatpush.msra.mxu0 0.0
        %476 = vmatpush.msra.mxu0 0.0
        %477 = vmatpush.msra.mxu0 0.0
        %478 = vmatpush.msra.mxu0 0.0
        %479 = vmatpush.msra.mxu0 0.0
        %480 = vmatpush.msra.mxu0 %v457
        %481 = vmatpush.msra.mxu0 %v456
        %482 = vmatmul.f32.gmra.mxu0 %v464
        %v483 = vpop.f32.mrf.mxu0
        %v484 = vadd.f32 %v460, %v483
        %485 = vdwg.mxu0
        %v486 = vld [vmem:[%s381] sm:$0xff]
        %v487 = vld [vmem:[%s3] sm:$0xff]
        %v488 = vld [vmem:[%s3 + $0x8] sm:$0xff]
        %v489 = vld [vmem:[%s3 + $0x10] sm:$0xff]
        %v490 = vld [vmem:[%s3 + $0x18] sm:$0xff]
        %v491 = vld [vmem:[%s391] sm:$0xff]
        %v492 = vld [vmem:[#allocation7] sm:$0xff]
        %v493 = vld [vmem:[#allocation7 + $0x8] sm:$0xff]
        %v494 = vld [vmem:[#allocation7 + $0x10] sm:$0xff]
        %v495 = vld [vmem:[#allocation7 + $0x18] sm:$0xff]
        %vm496 = vcmask 261120
        %v498 = vsel %vm496, %v491, 0
        %500 = vmatpush.msra.mxu0 0.0
        %501 = vmatpush.msra.mxu0 0.0
        %502 = vmatpush.msra.mxu0 0.0
        %503 = vmatpush.msra.mxu0 0.0
        %504 = vmatpush.msra.mxu0 0.0
        %505 = vmatpush.msra.mxu0 0.0
        %506 = vmatpush.msra.mxu0 0.0
        %507 = vmatpush.msra.mxu0 0.0
        %508 = vmatpush.msra.mxu0 0.0
        %509 = vmatpush.msra.mxu0 0.0
        %510 = vmatpush.msra.mxu0 0.0
        %511 = vmatpush.msra.mxu0 0.0
        %512 = vmatpush.msra.mxu0 %v495
        %513 = vmatpush.msra.mxu0 %v494
        %514 = vmatpush.msra.mxu0 %v493
        %515 = vmatpush.msra.mxu0 %v492
        %516 = vmatmul.f32.gmra.mxu0 %v498
        %v517 = vpop.f32.mrf.mxu0
        %v518 = vadd.f32 0.0, %v517
        %519 = vdwg.mxu0
        %v521 = vsel %vm496, %v486, 0
        %523 = vmatpush.msra.mxu0 0.0
        %524 = vmatpush.msra.mxu0 0.0
        %525 = vmatpush.msra.mxu0 0.0
        %526 = vmatpush.msra.mxu0 0.0
        %527 = vmatpush.msra.mxu0 0.0
        %528 = vmatpush.msra.mxu0 0.0
        %529 = vmatpush.msra.mxu0 0.0
        %530 = vmatpush.msra.mxu0 0.0
        %531 = vmatpush.msra.mxu0 0.0
        %532 = vmatpush.msra.mxu0 0.0
        %533 = vmatpush.msra.mxu0 0.0
        %534 = vmatpush.msra.mxu0 0.0
        %535 = vmatpush.msra.mxu0 %v490
        %536 = vmatpush.msra.mxu0 %v489
        %537 = vmatpush.msra.mxu0 %v488
        %538 = vmatpush.msra.mxu0 %v487
        %539 = vmatmul.f32.gmra.mxu0 %v521
        %v540 = vpop.f32.mrf.mxu0
        %v541 = vadd.f32 %v518, %v540
        %542 = vdwg.mxu0
        %v543 = vld [vmem:[#allocation8] sm:$0xff]
        %v544 = vld [vmem:[#allocation8 + $0x8] sm:$0xff]
        %v545 = vld [vmem:[#allocation8 + $0x10] sm:$0xff]
        %v546 = vld [vmem:[#allocation8 + $0x18] sm:$0xff]
        %v548 = vsel %vm496, %v484, 0
        %550 = vmatpush.msra.mxu0 0.0
        %551 = vmatpush.msra.mxu0 0.0
        %552 = vmatpush.msra.mxu0 0.0
        %553 = vmatpush.msra.mxu0 0.0
        %554 = vmatpush.msra.mxu0 0.0
        %555 = vmatpush.msra.mxu0 0.0
        %556 = vmatpush.msra.mxu0 0.0
        %557 = vmatpush.msra.mxu0 0.0
        %558 = vmatpush.msra.mxu0 0.0
        %559 = vmatpush.msra.mxu0 0.0
        %560 = vmatpush.msra.mxu0 0.0
        %561 = vmatpush.msra.mxu0 0.0
        %562 = vmatpush.msra.mxu0 %v546
        %563 = vmatpush.msra.mxu0 %v545
        %564 = vmatpush.msra.mxu0 %v544
        %565 = vmatpush.msra.mxu0 %v543
        %566 = vmatmul.f32.gmra.mxu0 %v548
        %v567 = vpop.f32.mrf.mxu0
        %v568 = vadd.f32 0.0, %v567
        %569 = vdwg.mxu0
        %v570 = vadd.f32 %v541, %v568
        %v571 = vld [vmem:[%s6] sm:$0x1]
        %v573 = vperm.slane %v571, 0
        %v575 = vadd.f32 %v570, %v573
        %576 = vrot.lane.b32.xlu0 %v484, 96
        %v577 = vpop.permute.xlu0 %576
        %v579 = vmul.f32 %v575, %v577
        %580 = vst.msk [vmem:[%s450] sm:$0xff] %vm496, %v579
        %s581 = sand.u32 %s242, 1
        %s582 = scalar_lea.sflag [#allocation4], %s581
        %s583 = sand.u32 %s242, 1
        %s584 = smul.addr %s583, 8
        %s585 = scalar_lea.vmem [#allocation11], %s584
        // Predicated region
        $region77: #{tpu_custom_call.1} parent=55 // pred_check
          %p586 = pneg %p252
        $region78: #{tpu_custom_call.1} parent=55 // pred_check_branch
          %588 = sbr.rel (%p586) target = $region80
        $region79: #{tpu_custom_call.1} parent=55 // pred_region
          %590 = vsyncadd %s582, 0
          %s591 = smul.addr %s30, 8
          %s592 = scalar_lea.hbm %s9, %s591
          %s594 = sshll.u32 %s585, 4
          %s595 = int_to_ptr.vmem [resolvable:$true] %s594
          %s596 = sshll.u32 %s592, 4
          %s597 = int_to_ptr.hbm [resolvable:$true] %s596
          %599 = dma.vmem_to_hbm [thread:$0]  %s595, 128, %s597, %s582
        $region80: #{tpu_custom_call.1} parent=55 // pred_fallthru
          _
      $region56: #{tpu_custom_call.1} parent=5 // pred_fallthru
        _
      %p600 = scmp.le.s32.totalorder 2, %s25
      // Predicated region
      $region81: #{tpu_custom_call.1} parent=5 // pred_check
        %p601 = pneg %p600
      $region82: #{tpu_custom_call.1} parent=5 // pred_check_branch
        %603 = sbr.rel (%p601) target = $region84
      $region83: #{tpu_custom_call.1} parent=5 // pred_region
        %s604 = ssub.s32 %s25, 2
        // Predicated region
        $region85: #{tpu_custom_call.1} parent=83 // pred_check
          %p605 = pneg %p258
        $region86: #{tpu_custom_call.1} parent=83 // pred_check_branch
          %607 = sbr.rel (%p605) target = $region88
        $region87: #{tpu_custom_call.1} parent=83 // pred_region
          %s608 = sand.u32 %s243, 1
          %s609 = scalar_lea.sflag [#allocation4], %s608
          %s610 = sand.u32 %s243, 1
          %s611 = smul.addr %s610, 8
          %s612 = scalar_lea.vmem [#allocation11], %s611
          %614 = dma.done %s609, 128
        $region88: #{tpu_custom_call.1} parent=83 // pred_fallthru
          _
      $region84: #{tpu_custom_call.1} parent=5 // pred_fallthru
        _
    $region6: #{tpu_custom_call.1} parent=1 // loop_footer
      %s29 = sadd.s32 1, %s25
    $region7: #{tpu_custom_call.1} parent=1 // loop_footer_branch
      %24 = sbr.rel target = $region3
    $region8: #{tpu_custom_call.1} parent=1 // loop_exit
      _
    %615 = vsyncpa [#allocation3], 1
    %s616 = scalar_lea.sflag [#allocation3], 1
    %617 = vsyncpa %s616, 1
    %618 = vsyncpa [#allocation6], 1
    %s619 = scalar_lea.sflag [#allocation6], 1
    %620 = vsyncpa %s619, 1
    %621 = vsyncpa [#allocation9], 1
    %622 = vsyncpa [#allocation4], 1
    %s623 = scalar_lea.sflag [#allocation4], 1
    %624 = vsyncpa %s623, 1

</llo_original>
